<compile_context>
chip_gen: v6e
topology: v6e:2x2x1
jax: 0.10.0
libtpu: 0.0.40
codegen_flags: <defaults>
</compile_context>

<pallas_src>
import functools

import jax
import jax.numpy as jnp
from jax.experimental import pallas as pl
from jax.experimental.pallas import tpu as pltpu

LANES = 128


def _round_up(x, m):
    return ((x + m - 1) // m) * m


# ----------------------------- Pallas kernel ------------------------------ #
def tgcn_kernel(a_ref, xw_ref, b_ref, h_ref, lwzr_ref, lwh_ref, o_ref):
    """One row-tile of nodes.

    a_ref   : (TM, Np)      row tile of the normalized adjacency (streamed)
    xw_ref  : (Np, 3*Fp)    fused X @ W_all slab (VMEM-resident across grid)
    b_ref   : (1, 3*Fp)     fused folded biases (f32)
    h_ref   : (TM, Fp)      hidden-state row tile
    lwzr_ref: (Fp, 2*Fp)    fused H-side weights for z and r gates
    lwh_ref : (Fp, Fp)      H-side weight for the candidate gate
    o_ref   : (TM, Fp)      new hidden-state row tile
    """
    fp = lwh_ref.shape[0]

    # Dominant (HBM-bound) matmul: one MXU pass yields all 3 gate pre-activations.
    gates = jnp.dot(a_ref[...], xw_ref[...],
                    preferred_element_type=jnp.float32) + b_ref[...]

    h32 = h_ref[...].astype(jnp.float32)

    # Fused H-side projection for the z and r gates (single MXU pass).
    hzr = jnp.dot(h_ref[...], lwzr_ref[...], preferred_element_type=jnp.float32)

    # Gate math kept in f32 (EUP sigmoid/tanh, f32 accumulation).
    z = jax.nn.sigmoid(gates[:, :fp] + hzr[:, :fp])
    r = jax.nn.sigmoid(gates[:, fp:2 * fp] + hzr[:, fp:])

    hr = (h32 * r).astype(lwh_ref.dtype)
    h_tilde = jnp.tanh(
        gates[:, 2 * fp:]
        + jnp.dot(hr, lwh_ref[...], preferred_element_type=jnp.float32))

    o_ref[...] = (z * h32 + (1.0 - z) * h_tilde).astype(o_ref.dtype)


# ----------------------------- JAX glue ----------------------------------- #
def gcn_norm_dense(edge_index, edge_weight, num_nodes, improved=False,
                   add_self_loops=True, dtype=jnp.float32):
    """Dense equivalent of PyG gcn_norm: A_hat = D^-1/2 (A + fill*I) D^-1/2,
    with A[dst, src] = edge_weight (flow = source_to_target).
    Compute this ONCE per graph and reuse across recurrent time steps."""
    src = edge_index[0]
    dst = edge_index[1]
    if edge_weight is None:
        edge_weight = jnp.ones(src.shape[0], dtype=dtype)
    A = jnp.zeros((num_nodes, num_nodes), dtype=dtype).at[dst, src].add(edge_weight)
    if add_self_loops:
        fill = 2.0 if improved else 1.0
        A = A + fill * jnp.eye(num_nodes, dtype=dtype)
    deg = A.sum(axis=1)
    dinv = jnp.where(deg > 0, 1.0 / jnp.sqrt(deg), 0.0)
    return dinv[:, None] * A * dinv[None, :]


def prepare_folded_params(params):
    """Fold GCNConv weights/biases through the conv-half of the concat-Linear
    and fuse the three gates into one lane-dense slab (padded to 128 lanes)."""
    F_in, F_out = params["W_z"].shape
    Fp = _round_up(F_out, LANES)

    def pad2(w, rows, cols):
        return jnp.pad(w, ((0, rows - w.shape[0]), (0, cols - w.shape[1])))

    w_parts, b_parts = [], []
    for g in ("z", "r", "h"):
        wp = params[f"W_{g}"] @ params[f"LW_{g}_c"]                       # (F_in, F_out)
        bp = params[f"b_{g}"] @ params[f"LW_{g}_c"] + params[f"Lb_{g}"]   # (1, F_out)
        w_parts.append(pad2(wp, F_in, Fp))
        b_parts.append(pad2(bp, 1, Fp))

    W_all = jnp.concatenate(w_parts, axis=1)                              # (F_in, 3*Fp)
    b_all = jnp.concatenate(b_parts, axis=1).astype(jnp.float32)          # (1, 3*Fp)
    LW_zr = jnp.concatenate([pad2(params["LW_z_h"], Fp, Fp),
                             pad2(params["LW_r_h"], Fp, Fp)], axis=1)     # (Fp, 2*Fp)
    LW_h = pad2(params["LW_h_h"], Fp, Fp)                                 # (Fp, Fp)
    return W_all, b_all, LW_zr, LW_h, Fp


@functools.partial(jax.jit, static_argnames=("compute_dtype", "row_tile"))
def _tgcn_pallas(A_hat, X, H, W_all, b_all, LW_zr, LW_h,
                 compute_dtype=jnp.float32, row_tile=256):
    N = X.shape[0]
    Fp = LW_h.shape[0]

    # Row tile: multiple of 8 sublanes, capped so double-buffered A tiles plus
    # the resident xw slab stay well inside the scoped VMEM budget (v7x: 64 MiB
    # physical; we request 48 MiB and keep TM <= 256).
    TM = min(row_tile, _round_up(N, 8))
    Np = _round_up(N, TM)

    Ap = jnp.pad(A_hat.astype(jnp.float32),
                 ((0, Np - N), (0, Np - N))).astype(compute_dtype)
    Xp = jnp.pad(X.astype(jnp.float32), ((0, Np - N), (0, 0)))
    Hp = jnp.pad(H.astype(jnp.float32),
                 ((0, Np - N), (0, Fp - H.shape[1]))).astype(compute_dtype)

    # Tiny (N, F_in) x (F_in, 3*Fp) matmul done once in plain JAX; the kernel's
    # big matmul then contracts over N directly: gates = A @ (X @ W_all).
    xw = (Xp @ W_all.astype(jnp.float32)).astype(compute_dtype)           # (Np, 3*Fp)

    lw_zr = LW_zr.astype(compute_dtype)
    lw_h = LW_h.astype(compute_dtype)

    grid = (Np // TM,)

    out = pl.pallas_call(
        tgcn_kernel,
        out_shape=jax.ShapeDtypeStruct((Np, Fp), X.dtype),
        grid=grid,
        in_specs=[
            pl.BlockSpec((TM, Np), lambda i: (i, 0)),          # A_hat row tile (streamed)
            pl.BlockSpec((Np, 3 * Fp), lambda i: (0, 0)),      # xw slab (resident)
            pl.BlockSpec((1, 3 * Fp), lambda i: (0, 0)),       # fused bias
            pl.BlockSpec((TM, Fp), lambda i: (i, 0)),          # H row tile
            pl.BlockSpec((Fp, 2 * Fp), lambda i: (0, 0)),      # fused LW_z_h | LW_r_h
            pl.BlockSpec((Fp, Fp), lambda i: (0, 0)),          # LW_h_h
        ],
        out_specs=pl.BlockSpec((TM, Fp), lambda i: (i, 0)),
        compiler_params=pltpu.CompilerParams(
            dimension_semantics=("parallel",),                 # shard rows across TCs (v7x)
            vmem_limit_bytes=48 * 1024 * 1024,
        ),
    )(Ap, xw, b_all, Hp, lw_zr, lw_h)

    return out


def tgcn_forward(params, X, edge_index, edge_weight=None, H=None, *,
                 A_hat=None, compute_dtype=jnp.float32, row_tile=256):
    """TGCN cell forward. Pass a precomputed A_hat to reuse it across steps."""
    N, _ = X.shape
    F_out = params["W_z"].shape[1]
    if H is None:
        H = jnp.zeros((N, F_out), dtype=X.dtype)
    if A_hat is None:
        A_hat = gcn_norm_dense(edge_index, edge_weight, N, dtype=jnp.float32)

    W_all, b_all, LW_zr, LW_h, _ = prepare_folded_params(params)
    out = _tgcn_pallas(A_hat, X, H, W_all, b_all, LW_zr, LW_h,
                       compute_dtype=compute_dtype, row_tile=row_tile)
    return out[:N, :F_out]


def init_params(key, in_channels, out_channels):
    ks = jax.random.split(key, 12)
    scale = 0.1
    p = {}
    # GCNConv weights (in, out) and biases (1, out)
    p["W_z"] = scale * jax.random.normal(ks[0], (in_channels, out_channels), jnp.float32)
    p["W_r"] = scale * jax.random.normal(ks[1], (in_channels, out_channels), jnp.float32)
    p["W_h"] = scale * jax.random.normal(ks[2], (in_channels, out_channels), jnp.float32)
    p["b_z"] = scale * jax.random.normal(ks[3], (1, out_channels), jnp.float32)
    p["b_r"] = scale * jax.random.normal(ks[4], (1, out_channels), jnp.float32)
    p["b_h"] = scale * jax.random.normal(ks[5], (1, out_channels), jnp.float32)
    # Linear(2*out, out) split into the conv-half and the H-half (both (out, out))
    p["LW_z_c"] = scale * jax.random.normal(ks[6], (out_channels, out_channels), jnp.float32)
    p["LW_z_h"] = scale * jax.random.normal(ks[7], (out_channels, out_channels), jnp.float32)
    p["LW_r_c"] = scale * jax.random.normal(ks[8], (out_channels, out_channels), jnp.float32)
    p["LW_r_h"] = scale * jax.random.normal(ks[9], (out_channels, out_channels), jnp.float32)
    p["LW_h_c"] = scale * jax.random.normal(ks[10], (out_channels, out_channels), jnp.float32)
    p["LW_h_h"] = scale * jax.random.normal(ks[11], (out_channels, out_channels), jnp.float32)
    p["Lb_z"] = jnp.zeros((1, out_channels), jnp.float32)
    p["Lb_r"] = jnp.zeros((1, out_channels), jnp.float32)
    p["Lb_h"] = jnp.zeros((1, out_channels), jnp.float32)
    return p


def tgcn_reference(params, X, edge_index, edge_weight=None, H=None):
    """Pure-JAX reference mirroring the PyTorch forward (for validation)."""
    N, _ = X.shape
    F_out = params["W_z"].shape[1]
    if H is None:
        H = jnp.zeros((N, F_out), dtype=X.dtype)
    A_hat = gcn_norm_dense(edge_index, edge_weight, N, dtype=X.dtype)
    ax = A_hat @ X
    cz = ax @ params["W_z"] + params["b_z"]
    cr = ax @ params["W_r"] + params["b_r"]
    ch = ax @ params["W_h"] + params["b_h"]
    Z = jax.nn.sigmoid(cz @ params["LW_z_c"] + H @ params["LW_z_h"] + params["Lb_z"])
    R = jax.nn.sigmoid(cr @ params["LW_r_c"] + H @ params["LW_r_h"] + params["Lb_r"])
    Ht = jnp.tanh(ch @ params["LW_h_c"] + (H * R) @ params["LW_h_h"] + params["Lb_h"])
    return Z * H + (1.0 - Z) * Ht


# ----------------------------- main ---------------------------------------- #
if __name__ == "__main__":
    key = jax.random.PRNGKey(0)
    k_param, k_x, k_h, k_w = jax.random.split(key, 4)

    N = 16            # number of graph nodes
    in_channels = 4
    out_channels = 8

    params = init_params(k_param, in_channels, out_channels)

    X = jax.random.normal(k_x, (N, in_channels), jnp.float32)
    H0 = jax.random.normal(k_h, (N, out_channels), jnp.float32)

    # Deterministic ring graph (both directions)
    src = jnp.arange(N, dtype=jnp.int32)
    dst = (src + 1) % N
    edge_index = jnp.stack([jnp.concatenate([src, dst]),
                            jnp.concatenate([dst, src])], axis=0)  # (2, 2N)
    edge_weight = jax.random.uniform(k_w, (2 * N,), jnp.float32, 0.5, 1.5)

    # Hoisted normalized adjacency: build once, reuse across recurrent steps.
    A_hat = gcn_norm_dense(edge_index, edge_weight, N, dtype=jnp.float32)

    ref = tgcn_reference(params, X, edge_index, edge_weight, H0)

    # f32 path (tight tolerance).
    out = tgcn_forward(params, X, edge_index, edge_weight, H0, A_hat=A_hat)
    out = jax.block_until_ready(out)
    assert out.shape == (N, out_channels)
    assert jnp.allclose(out, ref, atol=1e-4, rtol=1e-4), "f32 mismatch vs reference"

    # bf16 streaming path (halves A_hat bytes; f32 accumulation/activations kept).
    out_bf16 = tgcn_forward(params, X, edge_index, edge_weight, H0, A_hat=A_hat,
                            compute_dtype=jnp.bfloat16)
    out_bf16 = jax.block_until_ready(out_bf16)
    assert jnp.allclose(out_bf16, ref, atol=5e-2, rtol=5e-2), "bf16 mismatch vs reference"

    print("KERNEL_OK")
</pallas_src>

<mosaic_0001>
module attributes {stable_mosaic.version = 11 : i64} {
  func.func @tgcn_kernel(%arg0: i32, %arg1: memref<16x16xf32, #tpu.memory_space<vmem>>, %arg2: memref<16x384xf32, #tpu.memory_space<vmem>>, %arg3: memref<1x384xf32, #tpu.memory_space<vmem>>, %arg4: memref<16x128xf32, #tpu.memory_space<vmem>>, %arg5: memref<128x256xf32, #tpu.memory_space<vmem>>, %arg6: memref<128x128xf32, #tpu.memory_space<vmem>>, %arg7: memref<16x128xf32, #tpu.memory_space<vmem>>) attributes {dimension_semantics = [#tpu.dimension_semantics<parallel>], iteration_bounds = array<i64: 1>, scalar_prefetch = 0 : i64, scratch_operands = 0 : i64, tpu.core_type = #tpu.core_type<tc>, window_params = [{transform_indices = @transform_0, window_bounds = array<i64: 16, 16>}, {pipeline_mode = #tpu.pipeline_mode<synchronous>, transform_indices = @transform_1, window_bounds = array<i64: 16, 384>}, {pipeline_mode = #tpu.pipeline_mode<synchronous>, transform_indices = @transform_2, window_bounds = array<i64: 1, 384>}, {transform_indices = @transform_3, window_bounds = array<i64: 16, 128>}, {pipeline_mode = #tpu.pipeline_mode<synchronous>, transform_indices = @transform_4, window_bounds = array<i64: 128, 256>}, {pipeline_mode = #tpu.pipeline_mode<synchronous>, transform_indices = @transform_5, window_bounds = array<i64: 128, 128>}, {transform_indices = @transform_6, window_bounds = array<i64: 16, 128>}]} {
    %c0 = arith.constant 0 : index
    %c0_0 = arith.constant 0 : index
    %0 = vector.load %arg1[%c0, %c0_0] : memref<16x16xf32, #tpu.memory_space<vmem>>, vector<16x16xf32>
    %c0_1 = arith.constant 0 : index
    %c0_2 = arith.constant 0 : index
    %1 = vector.load %arg2[%c0_1, %c0_2] : memref<16x384xf32, #tpu.memory_space<vmem>>, vector<16x384xf32>
    %cst = arith.constant dense<0.000000e+00> : vector<16x384xf32>
    %2 = tpu.matmul %0, %1, %cst {dimension_numbers = #tpu.dot_dimension_numbers<[1], [0], [0], [1], [0, 0, 1, 1], [], []>} : vector<16x16xf32>, vector<16x384xf32>, vector<16x384xf32> -> vector<16x384xf32>
    %c0_3 = arith.constant 0 : index
    %c0_4 = arith.constant 0 : index
    %3 = vector.load %arg3[%c0_3, %c0_4] : memref<1x384xf32, #tpu.memory_space<vmem>>, vector<1x384xf32>
    %4 = vector.broadcast %3 : vector<1x384xf32> to vector<16x384xf32>
    %5 = arith.addf %2, %4 : vector<16x384xf32>
    %c0_5 = arith.constant 0 : index
    %c0_6 = arith.constant 0 : index
    %6 = vector.load %arg4[%c0_5, %c0_6] : memref<16x128xf32, #tpu.memory_space<vmem>>, vector<16x128xf32>
    %c0_7 = arith.constant 0 : index
    %c0_8 = arith.constant 0 : index
    %7 = vector.load %arg4[%c0_7, %c0_8] : memref<16x128xf32, #tpu.memory_space<vmem>>, vector<16x128xf32>
    %c0_9 = arith.constant 0 : index
    %c0_10 = arith.constant 0 : index
    %8 = vector.load %arg5[%c0_9, %c0_10] : memref<128x256xf32, #tpu.memory_space<vmem>>, vector<128x256xf32>
    %cst_11 = arith.constant dense<0.000000e+00> : vector<16x256xf32>
    %9 = tpu.matmul %7, %8, %cst_11 {dimension_numbers = #tpu.dot_dimension_numbers<[1], [0], [0], [1], [0, 0, 1, 1], [], []>} : vector<16x128xf32>, vector<128x256xf32>, vector<16x256xf32> -> vector<16x256xf32>
    %10 = vector.extract_strided_slice %5 {offsets = [0, 0], sizes = [16, 128], strides = [1, 1]} : vector<16x384xf32> to vector<16x128xf32>
    %11 = vector.extract_strided_slice %9 {offsets = [0, 0], sizes = [16, 128], strides = [1, 1]} : vector<16x256xf32> to vector<16x128xf32>
    %12 = arith.addf %10, %11 : vector<16x128xf32>
    %13 = arith.negf %12 : vector<16x128xf32>
    %14 = math.exp %13 : vector<16x128xf32>
    %cst_12 = arith.constant 1.000000e+00 : f32
    %15 = vector.broadcast %cst_12 : f32 to vector<16x128xf32>
    %16 = arith.addf %15, %14 : vector<16x128xf32>
    %17 = arith.divf %15, %16 : vector<16x128xf32>
    %18 = vector.extract_strided_slice %5 {offsets = [0, 128], sizes = [16, 128], strides = [1, 1]} : vector<16x384xf32> to vector<16x128xf32>
    %19 = vector.extract_strided_slice %9 {offsets = [0, 128], sizes = [16, 128], strides = [1, 1]} : vector<16x256xf32> to vector<16x128xf32>
    %20 = arith.addf %18, %19 : vector<16x128xf32>
    %21 = arith.negf %20 : vector<16x128xf32>
    %22 = math.exp %21 : vector<16x128xf32>
    %cst_13 = arith.constant 1.000000e+00 : f32
    %23 = vector.broadcast %cst_13 : f32 to vector<16x128xf32>
    %24 = arith.addf %23, %22 : vector<16x128xf32>
    %25 = arith.divf %23, %24 : vector<16x128xf32>
    %26 = arith.mulf %6, %25 : vector<16x128xf32>
    %27 = vector.extract_strided_slice %5 {offsets = [0, 256], sizes = [16, 128], strides = [1, 1]} : vector<16x384xf32> to vector<16x128xf32>
    %c0_14 = arith.constant 0 : index
    %c0_15 = arith.constant 0 : index
    %28 = vector.load %arg6[%c0_14, %c0_15] : memref<128x128xf32, #tpu.memory_space<vmem>>, vector<128x128xf32>
    %cst_16 = arith.constant dense<0.000000e+00> : vector<16x128xf32>
    %29 = tpu.matmul %26, %28, %cst_16 {dimension_numbers = #tpu.dot_dimension_numbers<[1], [0], [0], [1], [0, 0, 1, 1], [], []>} : vector<16x128xf32>, vector<128x128xf32>, vector<16x128xf32> -> vector<16x128xf32>
    %30 = arith.addf %27, %29 : vector<16x128xf32>
    %31 = math.tanh %30 : vector<16x128xf32>
    %32 = arith.mulf %17, %6 : vector<16x128xf32>
    %cst_17 = arith.constant 1.000000e+00 : f32
    %33 = vector.broadcast %cst_17 : f32 to vector<16x128xf32>
    %34 = arith.subf %33, %17 : vector<16x128xf32>
    %35 = arith.mulf %34, %31 : vector<16x128xf32>
    %36 = arith.addf %32, %35 : vector<16x128xf32>
    %c0_18 = arith.constant 0 : index
    %c0_19 = arith.constant 0 : index
    %37 = vector.load %arg7[%c0_18, %c0_19] : memref<16x128xf32, #tpu.memory_space<vmem>>, vector<16x128xf32>
    tpu.vector_store %arg7[%c0_18, %c0_19], %36 {strides = array<i32>} : memref<16x128xf32, #tpu.memory_space<vmem>>, vector<16x128xf32>,
    return
  }
  func.func @transform_0(%arg0: i32) -> (i32, i32) {
    %c0_i32 = arith.constant 0 : i32
    %c0_i32_0 = arith.constant 0 : i32
    return %arg0, %c0_i32 : i32, i32
  }
  func.func @transform_1(%arg0: i32) -> (i32, i32) {
    %c0_i32 = arith.constant 0 : i32
    %c0_i32_0 = arith.constant 0 : i32
    %c0_i32_1 = arith.constant 0 : i32
    return %c0_i32, %c0_i32_0 : i32, i32
  }
  func.func @transform_2(%arg0: i32) -> (i32, i32) {
    %c0_i32 = arith.constant 0 : i32
    %c0_i32_0 = arith.constant 0 : i32
    %c0_i32_1 = arith.constant 0 : i32
    return %c0_i32, %c0_i32_0 : i32, i32
  }
  func.func @transform_3(%arg0: i32) -> (i32, i32) {
    %c0_i32 = arith.constant 0 : i32
    %c0_i32_0 = arith.constant 0 : i32
    return %arg0, %c0_i32 : i32, i32
  }
  func.func @transform_4(%arg0: i32) -> (i32, i32) {
    %c0_i32 = arith.constant 0 : i32
    %c0_i32_0 = arith.constant 0 : i32
    %c0_i32_1 = arith.constant 0 : i32
    return %c0_i32, %c0_i32_0 : i32, i32
  }
  func.func @transform_5(%arg0: i32) -> (i32, i32) {
    %c0_i32 = arith.constant 0 : i32
    %c0_i32_0 = arith.constant 0 : i32
    %c0_i32_1 = arith.constant 0 : i32
    return %c0_i32, %c0_i32_0 : i32, i32
  }
  func.func @transform_6(%arg0: i32) -> (i32, i32) {
    %c0_i32 = arith.constant 0 : i32
    %c0_i32_0 = arith.constant 0 : i32
    return %arg0, %c0_i32 : i32, i32
  }
}

</mosaic_0001>

<llo_original>
// kernel: _tgcn_pallas.1
$region0: #{_tgcn_pallas.1}
  #allocation0 [shape = 'u32[]', space=smem, size = 0x4, offset = 0x4, fixed_abs, tag = 'smem constant byte address 0x4 - core index']
  #allocation1 [shape = 'u32[144,128]{1,0:T(1,128)}', space=vmem, size = 0x12000, scoped, tag = 'internal scratch']
  %s0 = inlined_call_operand.hbm [shape: f32[16,16], index: 0, kind: input, shape index: {}]
  %s1 = inlined_call_operand.vmem [shape: f32[16,384], index: 1, kind: input, shape index: {}]
  %s2 = inlined_call_operand.vmem [shape: f32[1,384], index: 2, kind: input, shape index: {}]
  %s3 = inlined_call_operand.vmem [shape: f32[16,128], index: 3, kind: input, shape index: {}]
  %s4 = inlined_call_operand.hbm [shape: f32[128,256], index: 4, kind: input, shape index: {}]
  %s5 = inlined_call_operand.vmem [shape: f32[128,128], index: 5, kind: input, shape index: {}]
  %s6 = inlined_call_operand.hbm [shape: f32[16,128], index: 6, kind: output, shape index: {}]
  %s7 = sld [smem:[#allocation0]]
  $region42: #{_tgcn_pallas.1} parent=0
    _
  %s9 = ssub.s32 1, %s7
  %s10 = scalar_select 0, %s9, %s7
  $region1: #{_tgcn_pallas.1} parent=0
    #allocation2 [shape = 'u8[8192]{0}', space=vmem, size = 0x2000, scoped, tag = 'input window, operand 0, single buffered']
    #allocation3 [shape = 's32[1]{0}', space=sflag, size = 0x4, scoped, tag = 'scoped memory for _tgcn_pallas.1']
    #allocation4 [shape = 's32[1]{0}', space=sflag, size = 0x4, scoped, tag = 'scoped memory for _tgcn_pallas.1']
    #allocation5 [shape = 'u8[131072]{0}', space=vmem, size = 0x20000, scoped, tag = 'input window, operand 4, single buffered']
    #allocation6 [shape = 's32[1]{0}', space=sflag, size = 0x4, scoped, tag = 'scoped memory for _tgcn_pallas.1']
    #allocation7 [shape = 'u8[8192]{0}', space=vmem, size = 0x2000, scoped, tag = 'output window, operand 0, single buffered']
    %11 = vsyncpa [#allocation3], 0
    %12 = vsyncpa [#allocation6], 0
    %13 = vsyncpa [#allocation4], 0
    // Predicated region
    $region2: #{_tgcn_pallas.1} parent=1 // pred_check
      _
    $region3: #{_tgcn_pallas.1} parent=1 // pred_check_branch
      %15 = sbr.rel (0) target = $region5
    $region4: #{_tgcn_pallas.1} parent=1 // pred_region
      %s17 = ssub.s32 256, 256
      %18 = vsyncadd [#allocation3], %s17
      %s19 = sshll.u32 [#allocation2], 4
      %s20 = int_to_ptr.vmem [resolvable:$true] %s19
      %25 = dma.hbm_to_vmem [thread:$0]  %s0, 256, %s20, [#allocation3], 128, 128, 8
    $region5: #{_tgcn_pallas.1} parent=1 // pred_fallthru
      _
    // Predicated region
    $region6: #{_tgcn_pallas.1} parent=1 // pred_check
      _
    $region7: #{_tgcn_pallas.1} parent=1 // pred_check_branch
      %27 = sbr.rel (0) target = $region9
    $region8: #{_tgcn_pallas.1} parent=1 // pred_region
      _
    $region9: #{_tgcn_pallas.1} parent=1 // pred_fallthru
      _
    // Predicated region
    $region10: #{_tgcn_pallas.1} parent=1 // pred_check
      _
    $region11: #{_tgcn_pallas.1} parent=1 // pred_check_branch
      %29 = sbr.rel (0) target = $region13
    $region12: #{_tgcn_pallas.1} parent=1 // pred_region
      _
    $region13: #{_tgcn_pallas.1} parent=1 // pred_fallthru
      _
    // Predicated region
    $region14: #{_tgcn_pallas.1} parent=1 // pred_check
      _
    $region15: #{_tgcn_pallas.1} parent=1 // pred_check_branch
      %31 = sbr.rel (0) target = $region17
    $region16: #{_tgcn_pallas.1} parent=1 // pred_region
      _
    $region17: #{_tgcn_pallas.1} parent=1 // pred_fallthru
      _
    // Predicated region
    $region18: #{_tgcn_pallas.1} parent=1 // pred_check
      _
    $region19: #{_tgcn_pallas.1} parent=1 // pred_check_branch
      %33 = sbr.rel (0) target = $region21
    $region20: #{_tgcn_pallas.1} parent=1 // pred_region
      %s35 = ssub.s32 4096, 4096
      %36 = vsyncadd [#allocation6], %s35
      %s37 = sshll.u32 [#allocation5], 4
      %s38 = int_to_ptr.vmem [resolvable:$true] %s37
      %43 = dma.hbm_to_vmem [thread:$0]  %s4, 4096, %s38, [#allocation6], 256, 256, 16
    $region21: #{_tgcn_pallas.1} parent=1 // pred_fallthru
      _
    // Predicated region
    $region22: #{_tgcn_pallas.1} parent=1 // pred_check
      _
    $region23: #{_tgcn_pallas.1} parent=1 // pred_check_branch
      %45 = sbr.rel (0) target = $region25
    $region24: #{_tgcn_pallas.1} parent=1 // pred_region
      _
    $region25: #{_tgcn_pallas.1} parent=1 // pred_fallthru
      _
    // Predicated region
    $region26: #{_tgcn_pallas.1} parent=1 // pred_check
      _
    $region27: #{_tgcn_pallas.1} parent=1 // pred_check_branch
      %47 = sbr.rel (0) target = $region29
    $region28: #{_tgcn_pallas.1} parent=1 // pred_region
      %48 = dma.done [#allocation3], 256
    $region29: #{_tgcn_pallas.1} parent=1 // pred_fallthru
      _
    // Predicated region
    $region30: #{_tgcn_pallas.1} parent=1 // pred_check
      _
    $region31: #{_tgcn_pallas.1} parent=1 // pred_check_branch
      %50 = sbr.rel (0) target = $region33
    $region32: #{_tgcn_pallas.1} parent=1 // pred_region
      %51 = dma.done [#allocation6], 4096
    $region33: #{_tgcn_pallas.1} parent=1 // pred_fallthru
      _
    %v52 = vld [vmem:[#allocation2] sm:$0xff]
    %v53 = vld [vmem:[#allocation2 + $0x8] sm:$0xff]
    %v54 = vld [vmem:[%s1] sm:$0xff]
    %v55 = vld [vmem:[%s1 + $0x8] sm:$0xff]
    %v56 = vld [vmem:[%s1 + $0x10] sm:$0xff]
    %v57 = vld [vmem:[%s1 + $0x18] sm:$0xff]
    %v58 = vld [vmem:[%s1 + $0x20] sm:$0xff]
    %v59 = vld [vmem:[%s1 + $0x28] sm:$0xff]
    %v60 = vld [vmem:[%s2] sm:$0x7]
    %v62 = vlaneseq
    %v63 = vshrl.u32 %v62, 7
    %v64 = vsub.s32 0, %v63
    %v65 = vrot.slane %v60, %v64
    %v66 = vlaneseq
    %v67 = vshrl.u32 %v66, 7
    %v68 = vsub.s32 1, %v67
    %v69 = vrot.slane %v60, %v68
    %v70 = vlaneseq
    %v71 = vshrl.u32 %v70, 7
    %v72 = vsub.s32 2, %v71
    %v73 = vrot.slane %v60, %v72
    %vm77 = vcmask 130048
    %v79 = vsel %vm77, %v52, 0
    %v82 = vsel %vm77, %v53, 0
    %84 = vmatprep.subr.mxu0 0.0
    %85 = vmatpush1.msra.mxu0 0.0
    %86 = vmatprep.subr.mxu0 0.0
    %87 = vmatpush1.msra.mxu0 0.0
    %88 = vmatprep.subr.mxu0 0.0
    %89 = vmatpush1.msra.mxu0 0.0
    %90 = vmatprep.subr.mxu0 0.0
    %91 = vmatpush1.msra.mxu0 0.0
    %92 = vmatprep.subr.mxu0 0.0
    %93 = vmatpush1.msra.mxu0 0.0
    %94 = vmatprep.subr.mxu0 0.0
    %95 = vmatpush1.msra.mxu0 0.0
    %96 = vmatprep.subr.mxu0 0.0
    %97 = vmatpush1.msra.mxu0 0.0
    %98 = vmatprep.subr.mxu0 0.0
    %99 = vmatpush1.msra.mxu0 0.0
    %100 = vmatprep.subr.mxu0 0.0
    %101 = vmatpush1.msra.mxu0 0.0
    %102 = vmatprep.subr.mxu0 0.0
    %103 = vmatpush1.msra.mxu0 0.0
    %104 = vmatprep.subr.mxu0 0.0
    %105 = vmatpush1.msra.mxu0 0.0
    %106 = vmatprep.subr.mxu0 0.0
    %107 = vmatpush1.msra.mxu0 0.0
    %108 = vmatprep.subr.mxu0 0.0
    %109 = vmatpush1.msra.mxu0 0.0
    %110 = vmatprep.subr.mxu0 0.0
    %111 = vmatpush1.msra.mxu0 0.0
    %112 = vmatprep.subr.mxu0 %v58
    %113 = vmatpush1.msra.mxu0 %v57
    %114 = vmatprep.subr.mxu0 %v55
    %115 = vmatpush1.msra.mxu0 %v54
    %116 = vmatprep.subr.mxu0 0.0
    %117 = vmatpush2.msra.mxu0 0.0
    %118 = vmatprep.subr.mxu0 0.0
    %119 = vmatpush2.msra.mxu0 0.0
    %120 = vmatprep.subr.mxu0 0.0
    %121 = vmatpush2.msra.mxu0 0.0
    %122 = vmatprep.subr.mxu0 0.0
    %123 = vmatpush2.msra.mxu0 0.0
    %124 = vmatprep.subr.mxu0 0.0
    %125 = vmatpush2.msra.mxu0 0.0
    %126 = vmatprep.subr.mxu0 0.0
    %127 = vmatpush2.msra.mxu0 0.0
    %128 = vmatprep.subr.mxu0 0.0
    %129 = vmatpush2.msra.mxu0 0.0
    %130 = vmatprep.subr.mxu0 0.0
    %131 = vmatpush2.msra.mxu0 0.0
    %132 = vmatprep.subr.mxu0 0.0
    %133 = vmatpush2.msra.mxu0 0.0
    %134 = vmatprep.subr.mxu0 0.0
    %135 = vmatpush2.msra.mxu0 0.0
    %136 = vmatprep.subr.mxu0 0.0
    %137 = vmatpush2.msra.mxu0 0.0
    %138 = vmatprep.subr.mxu0 0.0
    %139 = vmatpush2.msra.mxu0 0.0
    %140 = vmatprep.subr.mxu0 0.0
    %141 = vmatpush2.msra.mxu0 0.0
    %142 = vmatprep.subr.mxu0 0.0
    %143 = vmatpush2.msra.mxu0 0.0
    %144 = vmatprep.subr.mxu0 0.0
    %145 = vmatpush2.msra.mxu0 0.0
    %146 = vmatprep.subr.mxu0 0.0
    %147 = vmatpush2.msra.mxu0 0.0
    %148 = vmatprep.mubr.f32.mxu0 0.0
    %149 = vmatmul.mubr.f32.gmra.mxu0 %v79
    %v150 = vpop.f32.mrf.mxu0
    %v151 = vadd.f32 %v65, %v150
    %v152 = vpop.f32.mrf.mxu0
    %v153 = vadd.f32 %v69, %v152
    %154 = vmatprep.mubr.f32.mxu0 0.0
    %155 = vmatmul.mubr.f32.gmra.mxu0 %v82
    %v156 = vpop.f32.mrf.mxu0
    %v157 = vadd.f32 %v65, %v156
    %v158 = vpop.f32.mrf.mxu0
    %v159 = vadd.f32 %v69, %v158
    %160 = vdwg.mxu0
    %161 = vmatprep.subr.mxu0 0.0
    %162 = vmatpush1.msra.mxu0 0.0
    %163 = vmatprep.subr.mxu0 0.0
    %164 = vmatpush1.msra.mxu0 0.0
    %165 = vmatprep.subr.mxu0 0.0
    %166 = vmatpush1.msra.mxu0 0.0
    %167 = vmatprep.subr.mxu0 0.0
    %168 = vmatpush1.msra.mxu0 0.0
    %169 = vmatprep.subr.mxu0 0.0
    %170 = vmatpush1.msra.mxu0 0.0
    %171 = vmatprep.subr.mxu0 0.0
    %172 = vmatpush1.msra.mxu0 0.0
    %173 = vmatprep.subr.mxu0 0.0
    %174 = vmatpush1.msra.mxu0 0.0
    %175 = vmatprep.subr.mxu0 0.0
    %176 = vmatpush1.msra.mxu0 0.0
    %177 = vmatprep.subr.mxu0 0.0
    %178 = vmatpush1.msra.mxu0 0.0
    %179 = vmatprep.subr.mxu0 0.0
    %180 = vmatpush1.msra.mxu0 0.0
    %181 = vmatprep.subr.mxu0 0.0
    %182 = vmatpush1.msra.mxu0 0.0
    %183 = vmatprep.subr.mxu0 0.0
    %184 = vmatpush1.msra.mxu0 0.0
    %185 = vmatprep.subr.mxu0 0.0
    %186 = vmatpush1.msra.mxu0 0.0
    %187 = vmatprep.subr.mxu0 0.0
    %188 = vmatpush1.msra.mxu0 0.0
    %189 = vmatprep.subr.mxu0 0.0
    %190 = vmatpush1.msra.mxu0 %v59
    %191 = vmatprep.subr.mxu0 0.0
    %192 = vmatpush1.msra.mxu0 %v56
    %193 = vmatprep.subr.mxu0 0.0
    %194 = vmatpush2.msra.mxu0 0.0
    %195 = vmatprep.subr.mxu0 0.0
    %196 = vmatpush2.msra.mxu0 0.0
    %197 = vmatprep.subr.mxu0 0.0
    %198 = vmatpush2.msra.mxu0 0.0
    %199 = vmatprep.subr.mxu0 0.0
    %200 = vmatpush2.msra.mxu0 0.0
    %201 = vmatprep.subr.mxu0 0.0
    %202 = vmatpush2.msra.mxu0 0.0
    %203 = vmatprep.subr.mxu0 0.0
    %204 = vmatpush2.msra.mxu0 0.0
    %205 = vmatprep.subr.mxu0 0.0
    %206 = vmatpush2.msra.mxu0 0.0
    %207 = vmatprep.subr.mxu0 0.0
    %208 = vmatpush2.msra.mxu0 0.0
    %209 = vmatprep.subr.mxu0 0.0
    %210 = vmatpush2.msra.mxu0 0.0
    %211 = vmatprep.subr.mxu0 0.0
    %212 = vmatpush2.msra.mxu0 0.0
    %213 = vmatprep.subr.mxu0 0.0
    %214 = vmatpush2.msra.mxu0 0.0
    %215 = vmatprep.subr.mxu0 0.0
    %216 = vmatpush2.msra.mxu0 0.0
    %217 = vmatprep.subr.mxu0 0.0
    %218 = vmatpush2.msra.mxu0 0.0
    %219 = vmatprep.subr.mxu0 0.0
    %220 = vmatpush2.msra.mxu0 0.0
    %221 = vmatprep.subr.mxu0 0.0
    %222 = vmatpush2.msra.mxu0 0.0
    %223 = vmatprep.subr.mxu0 0.0
    %224 = vmatpush2.msra.mxu0 0.0
    %225 = vmatprep.mubr.f32.mxu0 0.0
    %226 = vmatmul.mubr.f32.gmra.mxu0 %v79
    %v227 = vpop.f32.mrf.mxu0
    %v228 = vadd.f32 %v73, %v227
    %v229 = vpop.f32.mrf.mxu0
    %230 = vmatprep.mubr.f32.mxu0 0.0
    %231 = vmatmul.mubr.f32.gmra.mxu0 %v82
    %v232 = vpop.f32.mrf.mxu0
    %v233 = vadd.f32 %v73, %v232
    %v234 = vpop.f32.mrf.mxu0
    %235 = vdwg.mxu0
    %v236 = vld [vmem:[%s3] sm:$0xff]
    %v237 = vld [vmem:[%s3 + $0x8] sm:$0xff]
    %v238 = vld [vmem:[#allocation5] sm:$0xff]
    %v239 = vld [vmem:[#allocation5 + $0x8] sm:$0xff]
    %v240 = vld [vmem:[#allocation5 + $0x10] sm:$0xff]
    %v241 = vld [vmem:[#allocation5 + $0x18] sm:$0xff]
    %v242 = vld [vmem:[#allocation5 + $0x20] sm:$0xff]
    %v243 = vld [vmem:[#allocation5 + $0x28] sm:$0xff]
    %v244 = vld [vmem:[#allocation5 + $0x30] sm:$0xff]
    %v245 = vld [vmem:[#allocation5 + $0x38] sm:$0xff]
    %v246 = vld [vmem:[#allocation5 + $0x40] sm:$0xff]
    %v247 = vld [vmem:[#allocation5 + $0x48] sm:$0xff]
    %v248 = vld [vmem:[#allocation5 + $0x50] sm:$0xff]
    %v249 = vld [vmem:[#allocation5 + $0x58] sm:$0xff]
    %v250 = vld [vmem:[#allocation5 + $0x60] sm:$0xff]
    %v251 = vld [vmem:[#allocation5 + $0x68] sm:$0xff]
    %v252 = vld [vmem:[#allocation5 + $0x70] sm:$0xff]
    %v253 = vld [vmem:[#allocation5 + $0x78] sm:$0xff]
    %v254 = vld [vmem:[#allocation5 + $0x80] sm:$0xff]
    %v255 = vld [vmem:[#allocation5 + $0x88] sm:$0xff]
    %v256 = vld [vmem:[#allocation5 + $0x90] sm:$0xff]
    %v257 = vld [vmem:[#allocation5 + $0x98] sm:$0xff]
    %v258 = vld [vmem:[#allocation5 + $0xa0] sm:$0xff]
    %v259 = vld [vmem:[#allocation5 + $0xa8] sm:$0xff]
    %v260 = vld [vmem:[#allocation5 + $0xb0] sm:$0xff]
    %v261 = vld [vmem:[#allocation5 + $0xb8] sm:$0xff]
    %v262 = vld [vmem:[#allocation5 + $0xc0] sm:$0xff]
    %v263 = vld [vmem:[#allocation5 + $0xc8] sm:$0xff]
    %v264 = vld [vmem:[#allocation5 + $0xd0] sm:$0xff]
    %v265 = vld [vmem:[#allocation5 + $0xd8] sm:$0xff]
    %v266 = vld [vmem:[#allocation5 + $0xe0] sm:$0xff]
    %v267 = vld [vmem:[#allocation5 + $0xe8] sm:$0xff]
    %v268 = vld [vmem:[#allocation5 + $0xf0] sm:$0xff]
    %v269 = vld [vmem:[#allocation5 + $0xf8] sm:$0xff]
    %270 = vmatprep.subr.mxu0 %v269
    %271 = vmatpush1.msra.mxu0 %v268
    %272 = vmatprep.subr.mxu0 %v267
    %273 = vmatpush1.msra.mxu0 %v266
    %274 = vmatprep.subr.mxu0 %v265
    %275 = vmatpush1.msra.mxu0 %v264
    %276 = vmatprep.subr.mxu0 %v263
    %277 = vmatpush1.msra.mxu0 %v262
    %278 = vmatprep.subr.mxu0 %v261
    %279 = vmatpush1.msra.mxu0 %v260
    %280 = vmatprep.subr.mxu0 %v259
    %281 = vmatpush1.msra.mxu0 %v258
    %282 = vmatprep.subr.mxu0 %v257
    %283 = vmatpush1.msra.mxu0 %v256
    %284 = vmatprep.subr.mxu0 %v255
    %285 = vmatpush1.msra.mxu0 %v254
    %286 = vmatprep.subr.mxu0 %v253
    %287 = vmatpush1.msra.mxu0 %v252
    %288 = vmatprep.subr.mxu0 %v251
    %289 = vmatpush1.msra.mxu0 %v250
    %290 = vmatprep.subr.mxu0 %v249
    %291 = vmatpush1.msra.mxu0 %v248
    %292 = vmatprep.subr.mxu0 %v247
    %293 = vmatpush1.msra.mxu0 %v246
    %294 = vmatprep.subr.mxu0 %v245
    %295 = vmatpush1.msra.mxu0 %v244
    %296 = vmatprep.subr.mxu0 %v243
    %297 = vmatpush1.msra.mxu0 %v242
    %298 = vmatprep.subr.mxu0 %v241
    %299 = vmatpush1.msra.mxu0 %v240
    %300 = vmatprep.subr.mxu0 %v239
    %301 = vmatpush1.msra.mxu0 %v238
    %302 = vmatprep.subr.mxu0 0.0
    %303 = vmatpush2.msra.mxu0 0.0
    %304 = vmatprep.subr.mxu0 0.0
    %305 = vmatpush2.msra.mxu0 0.0
    %306 = vmatprep.subr.mxu0 0.0
    %307 = vmatpush2.msra.mxu0 0.0
    %308 = vmatprep.subr.mxu0 0.0
    %309 = vmatpush2.msra.mxu0 0.0
    %310 = vmatprep.subr.mxu0 0.0
    %311 = vmatpush2.msra.mxu0 0.0
    %312 = vmatprep.subr.mxu0 0.0
    %313 = vmatpush2.msra.mxu0 0.0
    %314 = vmatprep.subr.mxu0 0.0
    %315 = vmatpush2.msra.mxu0 0.0
    %316 = vmatprep.subr.mxu0 0.0
    %317 = vmatpush2.msra.mxu0 0.0
    %318 = vmatprep.subr.mxu0 0.0
    %319 = vmatpush2.msra.mxu0 0.0
    %320 = vmatprep.subr.mxu0 0.0
    %321 = vmatpush2.msra.mxu0 0.0
    %322 = vmatprep.subr.mxu0 0.0
    %323 = vmatpush2.msra.mxu0 0.0
    %324 = vmatprep.subr.mxu0 0.0
    %325 = vmatpush2.msra.mxu0 0.0
    %326 = vmatprep.subr.mxu0 0.0
    %327 = vmatpush2.msra.mxu0 0.0
    %328 = vmatprep.subr.mxu0 0.0
    %329 = vmatpush2.msra.mxu0 0.0
    %330 = vmatprep.subr.mxu0 0.0
    %331 = vmatpush2.msra.mxu0 0.0
    %332 = vmatprep.subr.mxu0 0.0
    %333 = vmatpush2.msra.mxu0 0.0
    %334 = vmatprep.mubr.f32.mxu0 0.0
    %335 = vmatmul.mubr.f32.gmra.mxu0 %v236
    %v336 = vpop.f32.mrf.mxu0
    %v337 = vadd.f32 0.0, %v336
    %v338 = vpop.f32.mrf.mxu0
    %v339 = vadd.f32 0.0, %v338
    %340 = vmatprep.mubr.f32.mxu0 0.0
    %341 = vmatmul.mubr.f32.gmra.mxu0 %v237
    %v342 = vpop.f32.mrf.mxu0
    %v343 = vadd.f32 0.0, %v342
    %v344 = vpop.f32.mrf.mxu0
    %v345 = vadd.f32 0.0, %v344
    %346 = vdwg.mxu0
    %v347 = vadd.f32 %v151, %v337
    %v348 = vadd.f32 %v157, %v343
    %v349 = vxor.u32 %v347, 2147483648
    %v350 = vxor.u32 %v348, 2147483648
    %v351 = vmul.f32 %v349, 1.442695
    %v352 = vpow.pop %v351
    %v353 = vmul.f32 %v350, 1.442695
    %v354 = vpow.pop %v353
    %v355 = vadd.f32 %v352, 1.0
    %v356 = vadd.f32 %v354, 1.0
    %v357 = vrcp.pop %v355
    %v358 = vmul.f32 1.0, %v357
    %v359 = vrcp.pop %v356
    %v360 = vmul.f32 1.0, %v359
    %v361 = vadd.f32 %v153, %v339
    %v362 = vadd.f32 %v159, %v345
    %v363 = vxor.u32 %v361, 2147483648
    %v364 = vxor.u32 %v362, 2147483648
    %v365 = vmul.f32 %v363, 1.442695
    %v366 = vpow.pop %v365
    %v367 = vmul.f32 %v364, 1.442695
    %v368 = vpow.pop %v367
    %v369 = vadd.f32 %v366, 1.0
    %v370 = vadd.f32 %v368, 1.0
    %v371 = vrcp.pop %v369
    %v372 = vmul.f32 1.0, %v371
    %v373 = vrcp.pop %v370
    %v374 = vmul.f32 1.0, %v373
    %v375 = vmul.f32 %v236, %v372
    %v376 = vmul.f32 %v237, %v374
    %v377 = vld [vmem:[%s5] sm:$0xff]
    %v378 = vld [vmem:[%s5 + $0x8] sm:$0xff]
    %v379 = vld [vmem:[%s5 + $0x10] sm:$0xff]
    %v380 = vld [vmem:[%s5 + $0x18] sm:$0xff]
    %v381 = vld [vmem:[%s5 + $0x20] sm:$0xff]
    %v382 = vld [vmem:[%s5 + $0x28] sm:$0xff]
    %v383 = vld [vmem:[%s5 + $0x30] sm:$0xff]
    %v384 = vld [vmem:[%s5 + $0x38] sm:$0xff]
    %v385 = vld [vmem:[%s5 + $0x40] sm:$0xff]
    %v386 = vld [vmem:[%s5 + $0x48] sm:$0xff]
    %v387 = vld [vmem:[%s5 + $0x50] sm:$0xff]
    %v388 = vld [vmem:[%s5 + $0x58] sm:$0xff]
    %v389 = vld [vmem:[%s5 + $0x60] sm:$0xff]
    %v390 = vld [vmem:[%s5 + $0x68] sm:$0xff]
    %v391 = vld [vmem:[%s5 + $0x70] sm:$0xff]
    %v392 = vld [vmem:[%s5 + $0x78] sm:$0xff]
    %393 = vmatprep.subr.mxu0 0.0
    %394 = vmatpush1.msra.mxu0 %v392
    %395 = vmatprep.subr.mxu0 0.0
    %396 = vmatpush1.msra.mxu0 %v391
    %397 = vmatprep.subr.mxu0 0.0
    %398 = vmatpush1.msra.mxu0 %v390
    %399 = vmatprep.subr.mxu0 0.0
    %400 = vmatpush1.msra.mxu0 %v389
    %401 = vmatprep.subr.mxu0 0.0
    %402 = vmatpush1.msra.mxu0 %v388
    %403 = vmatprep.subr.mxu0 0.0
    %404 = vmatpush1.msra.mxu0 %v387
    %405 = vmatprep.subr.mxu0 0.0
    %406 = vmatpush1.msra.mxu0 %v386
    %407 = vmatprep.subr.mxu0 0.0
    %408 = vmatpush1.msra.mxu0 %v385
    %409 = vmatprep.subr.mxu0 0.0
    %410 = vmatpush1.msra.mxu0 %v384
    %411 = vmatprep.subr.mxu0 0.0
    %412 = vmatpush1.msra.mxu0 %v383
    %413 = vmatprep.subr.mxu0 0.0
    %414 = vmatpush1.msra.mxu0 %v382
    %415 = vmatprep.subr.mxu0 0.0
    %416 = vmatpush1.msra.mxu0 %v381
    %417 = vmatprep.subr.mxu0 0.0
    %418 = vmatpush1.msra.mxu0 %v380
    %419 = vmatprep.subr.mxu0 0.0
    %420 = vmatpush1.msra.mxu0 %v379
    %421 = vmatprep.subr.mxu0 0.0
    %422 = vmatpush1.msra.mxu0 %v378
    %423 = vmatprep.subr.mxu0 0.0
    %424 = vmatpush1.msra.mxu0 %v377
    %425 = vmatprep.subr.mxu0 0.0
    %426 = vmatpush2.msra.mxu0 0.0
    %427 = vmatprep.subr.mxu0 0.0
    %428 = vmatpush2.msra.mxu0 0.0
    %429 = vmatprep.subr.mxu0 0.0
    %430 = vmatpush2.msra.mxu0 0.0
    %431 = vmatprep.subr.mxu0 0.0
    %432 = vmatpush2.msra.mxu0 0.0
    %433 = vmatprep.subr.mxu0 0.0
    %434 = vmatpush2.msra.mxu0 0.0
    %435 = vmatprep.subr.mxu0 0.0
    %436 = vmatpush2.msra.mxu0 0.0
    %437 = vmatprep.subr.mxu0 0.0
    %438 = vmatpush2.msra.mxu0 0.0
    %439 = vmatprep.subr.mxu0 0.0
    %440 = vmatpush2.msra.mxu0 0.0
    %441 = vmatprep.subr.mxu0 0.0
    %442 = vmatpush2.msra.mxu0 0.0
    %443 = vmatprep.subr.mxu0 0.0
    %444 = vmatpush2.msra.mxu0 0.0
    %445 = vmatprep.subr.mxu0 0.0
    %446 = vmatpush2.msra.mxu0 0.0
    %447 = vmatprep.subr.mxu0 0.0
    %448 = vmatpush2.msra.mxu0 0.0
    %449 = vmatprep.subr.mxu0 0.0
    %450 = vmatpush2.msra.mxu0 0.0
    %451 = vmatprep.subr.mxu0 0.0
    %452 = vmatpush2.msra.mxu0 0.0
    %453 = vmatprep.subr.mxu0 0.0
    %454 = vmatpush2.msra.mxu0 0.0
    %455 = vmatprep.subr.mxu0 0.0
    %456 = vmatpush2.msra.mxu0 0.0
    %457 = vmatprep.mubr.f32.mxu0 0.0
    %458 = vmatmul.mubr.f32.gmra.mxu0 %v375
    %v459 = vpop.f32.mrf.mxu0
    %v460 = vadd.f32 0.0, %v459
    %v461 = vpop.f32.mrf.mxu0
    %462 = vmatprep.mubr.f32.mxu0 0.0
    %463 = vmatmul.mubr.f32.gmra.mxu0 %v376
    %v464 = vpop.f32.mrf.mxu0
    %v465 = vadd.f32 0.0, %v464
    %v466 = vpop.f32.mrf.mxu0
    %467 = vdwg.mxu0
    %v468 = vadd.f32 %v228, %v460
    %v469 = vadd.f32 %v233, %v465
    %v470 = vtanh.pop %v468
    %v471 = vtanh.pop %v469
    %v472 = vmul.f32 %v358, %v236
    %v473 = vmul.f32 %v360, %v237
    %v474 = vsub.f32 1.0, %v358
    %v475 = vsub.f32 1.0, %v360
    %v476 = vmul.f32 %v474, %v470
    %v477 = vmul.f32 %v475, %v471
    %v478 = vadd.f32 %v472, %v476
    %v479 = vadd.f32 %v473, %v477
    %480 = vst [vmem:[#allocation7] sm:$0xff] %v478
    %481 = vst [vmem:[#allocation7 + $0x8] sm:$0xff] %v479
    // Predicated region
    $region34: #{_tgcn_pallas.1} parent=1 // pred_check
      _
    $region35: #{_tgcn_pallas.1} parent=1 // pred_check_branch
      %483 = sbr.rel (0) target = $region37
    $region36: #{_tgcn_pallas.1} parent=1 // pred_region
      %s485 = ssub.s32 256, 256
      %486 = vsyncadd [#allocation4], %s485
      %s487 = sshll.u32 [#allocation7], 4
      %s488 = int_to_ptr.vmem [resolvable:$true] %s487
      %493 = dma.vmem_to_hbm [thread:$0]  %s488, 256, %s6, [#allocation4], 128, 128, 8
    $region37: #{_tgcn_pallas.1} parent=1 // pred_fallthru
      _
    // Predicated region
    $region38: #{_tgcn_pallas.1} parent=1 // pred_check
      _
    $region39: #{_tgcn_pallas.1} parent=1 // pred_check_branch
      %495 = sbr.rel (0) target = $region41
    $region40: #{_tgcn_pallas.1} parent=1 // pred_region
      %496 = dma.done [#allocation4], 256
    $region41: #{_tgcn_pallas.1} parent=1 // pred_fallthru
      _
    %497 = vsyncpa [#allocation3], 1
    %498 = vsyncpa [#allocation6], 1
    %499 = vsyncpa [#allocation4], 1

</llo_original>
